<compile_context>
chip_gen: v6e
topology: v6e:2x2x1
jax: 0.10.0
libtpu: 0.0.40
codegen_flags: <defaults>
</compile_context>

<pallas_src>
import functools

import jax
import jax.numpy as jnp
from jax import lax
from jax.experimental import pallas as pl
from jax.experimental.pallas import tpu as pltpu


def attention_kernel(x_ref, w1_ref, b1_ref, w2_ref, b2_ref, wp_ref, bp_ref,
                     out_ref, *, s_valid):
    tb, sp, h_dim = x_ref.shape
    hh = w1_ref.shape[1]

    x = x_ref[...]                                    # (TB, Sp, H)
    # Sp is padded to the sublane pack of x.dtype in the wrapper, so this
    # reshape is a layout-preserving view (no VMEM copy).
    xf = x.reshape(tb * sp, h_dim)

    # ---- attention MLP: Linear(H -> H//2) + tanh, one big MXU matmul (f32 acc) ----
    h = jnp.tanh(
        jnp.dot(xf, w1_ref[...], preferred_element_type=jnp.float32)
        + b1_ref[...].astype(jnp.float32)
    ).reshape(tb, sp, hh)                             # (TB, Sp, Hh) f32

    # ---- Linear(H//2 -> 1): N=1, so reduce over lanes (VPU/XLU), not the MXU ----
    w2_row = w2_ref[...].astype(jnp.float32).reshape(1, 1, hh)
    scores = jnp.sum(h * w2_row, axis=-1) + b2_ref[0, 0]          # (TB, Sp) f32

    if sp != s_valid:  # static branch: mask the zero-padded sequence positions
        pos = lax.broadcasted_iota(jnp.int32, (tb, sp), 1)
        scores = jnp.where(pos < s_valid, scores, -1e30)

    # ---- softmax over S, stats in f32.  Normalization is applied AFTER the
    # f32-accumulating matmul so the MXU coefficients can stay in x.dtype. ----
    m = jnp.max(scores, axis=-1, keepdims=True)
    e = jnp.exp(scores - m)                                       # (TB, Sp) f32
    inv_denom = pl.reciprocal(jnp.sum(e, axis=-1, keepdims=True), approx=True)

    # ---- fuse sum_S(e * x) and sum_S(x) into ONE batched MXU matmul:
    #      per batch element [[e_b]; [1]] (2, Sp) @ x_b (Sp, H) -> (2, H). ----
    coeff = jnp.concatenate(
        [e[:, None, :].astype(x.dtype), jnp.ones((tb, 1, sp), dtype=x.dtype)],
        axis=1,
    )                                                             # (TB, 2, Sp)
    red = jnp.einsum("bks,bsh->bkh", coeff, x,
                     preferred_element_type=jnp.float32)          # (TB, 2, H) f32
    attended = red[:, 0, :] * inv_denom                           # (TB, H) f32
    mean_x = red[:, 1, :] * (1.0 / s_valid)                       # (TB, H) f32

    # ---- skip projection: (TB, H) @ (H, H) on the MXU, f32 accumulation ----
    skip = (
        jnp.dot(mean_x.astype(wp_ref.dtype), wp_ref[...],
                preferred_element_type=jnp.float32)
        + bp_ref[...].astype(jnp.float32)
    )                                                             # (TB, H)

    out_ref[...] = (attended + skip).astype(out_ref.dtype)


def _round_up(n, m):
    return ((n + m - 1) // m) * m


def _sublane_pack(dtype):
    # rows per sublane tile: 8 for f32, 16 for bf16, 32 for 8-bit types
    return 8 * max(1, 4 // jnp.dtype(dtype).itemsize)


def _pick_tb(batch, sp, h, hh, x_itemsize, w_itemsize, out_itemsize,
             budget_bytes=20 << 20, min_steps=4):
    """Pick the per-step batch tile.

    Working-set model: 2x double-buffered x block + 2x weights (conservative:
    assume double-buffered even when we manage to single-buffer them) + 2x
    output block + the f32 intermediates (h, red, scores/e/coeff).  Prefer the
    largest TB that (a) fits the budget, (b) is sublane-aligned (TB % 8 == 0 or
    TB == batch, for the (TB, H) output block), and (c) leaves >= min_steps grid
    steps so the x DMA pipelines against compute and v7x can shard the parallel
    batch axis across both TensorCores.
    """
    weight_bytes = (h * hh + 2 * hh + h * h + h) * w_itemsize  # w1,b1,w2,wp,bp

    def working_set(tb):
        x_blk = tb * sp * h * x_itemsize
        out_blk = tb * h * out_itemsize
        f32_tmp = tb * sp * hh * 4 + 2 * tb * h * 4 + 6 * tb * sp * 4
        return 2 * x_blk + 2 * out_blk + 2 * weight_bytes + f32_tmp

    cands = [t for t in range(1, batch + 1)
             if batch % t == 0 and (t % 8 == 0 or t == batch)]
    fitting = [t for t in cands if working_set(t) <= budget_bytes]
    if not fitting:
        # TODO(synk): add flash-style S tiling for shapes where no TB fits.
        fitting = [min(cands)]
    multi = [t for t in fitting if batch // t >= min_steps]
    tb = max(multi) if multi else max(fitting)
    return tb, working_set(tb)


def _make_call(batch, sp, h, hh, s_valid, tb, x_dtype, out_dtype,
               single_buffer_weights, vmem_limit_bytes, weight_nbytes):
    full2 = lambda i: (0, 0)

    def wspec(shape):
        if single_buffer_weights:
            # grid-invariant: one in-flight buffer is enough -> halves weight VMEM
            return pl.BlockSpec(shape, full2, pipeline_mode=pl.Buffered(1))
        return pl.BlockSpec(shape, full2)

    flops = (2 * batch * sp * h * hh      # attention MLP matmul
             + 2 * batch * sp * hh        # score lane-reduce
             + 4 * batch * sp * h         # fused attended + sum matmul (M=2)
             + 2 * batch * h * h)         # skip projection
    transcendentals = batch * sp * hh + batch * sp        # tanh + exp
    bytes_accessed = (batch * sp * h * jnp.dtype(x_dtype).itemsize
                      + weight_nbytes
                      + batch * h * jnp.dtype(out_dtype).itemsize)

    return pl.pallas_call(
        functools.partial(attention_kernel, s_valid=s_valid),
        out_shape=jax.ShapeDtypeStruct((batch, h), out_dtype),
        grid_spec=pltpu.PrefetchScalarGridSpec(
            num_scalar_prefetch=0,
            grid=(batch // tb,),
            in_specs=[
                pl.BlockSpec((tb, sp, h), lambda i: (i, 0, 0)),      # x (streamed)
                wspec((h, hh)),                                      # w1
                wspec((1, hh)),                                      # b1
                wspec((1, hh)),                                      # w2 as a row
                pl.BlockSpec(memory_space=pltpu.MemorySpace.SMEM),   # b2 scalar
                wspec((h, h)),                                       # wp
                wspec((1, h)),                                       # bp
            ],
            out_specs=pl.BlockSpec((tb, h), lambda i: (i, 0)),
        ),
        compiler_params=pltpu.CompilerParams(
            # parallel batch axis -> v7x can shard batch tiles across both TCs
            dimension_semantics=("parallel",),
            vmem_limit_bytes=vmem_limit_bytes,
        ),
        cost_estimate=pl.CostEstimate(flops=flops,
                                      transcendentals=transcendentals,
                                      bytes_accessed=bytes_accessed),
    )


_BUFFERED_WEIGHTS_OK = True  # flips to False if this jax rejects Buffered(1)


def attention_module(x, w1, b1, w2, b2, wp, bp):
    """x: (B, S, H).  Weights stored as (in, out): y = x @ W + b.
    w1: (H, H//2)  b1: (1, H//2)  w2: (H//2, 1)  b2: (1, 1)  wp: (H, H)  bp: (1, H).
    Returns (B, H).  Pass bf16 x / weights for the mem-bound fast path."""
    global _BUFFERED_WEIGHTS_OK
    B, S, H = x.shape
    Hh = w1.shape[1]
    x_dtype = x.dtype

    # Pad only the (small) S remainder so in-kernel reshapes are views; H is
    # deliberately NOT padded (avoids a full extra HBM pass over x).
    pack = _sublane_pack(x_dtype)
    Sp = _round_up(S, pack)
    x_p = jnp.pad(x, ((0, 0), (0, Sp - S), (0, 0))) if Sp != S else x

    w2_row = w2.reshape(1, Hh)
    b2_s = jnp.asarray(b2, dtype=jnp.float32).reshape(1, 1)  # scalar, lives in SMEM

    x_itemsize = jnp.dtype(x_dtype).itemsize
    w_itemsize = jnp.dtype(w1.dtype).itemsize
    weight_nbytes = (H * Hh + 2 * Hh + H * H + H) * w_itemsize
    tb, working_set = _pick_tb(B, Sp, H, Hh, x_itemsize, w_itemsize, x_itemsize)
    vmem_limit = int(min(max(working_set * 5 // 4, 32 << 20), 56 << 20))

    args = (x_p, w1, b1, w2_row, b2_s, wp, bp)
    if _BUFFERED_WEIGHTS_OK:
        try:
            fn = _make_call(B, Sp, H, Hh, S, tb, x_dtype, x_dtype,
                            True, vmem_limit, weight_nbytes)
            return fn(*args)
        except Exception:
            _BUFFERED_WEIGHTS_OK = False  # fall back to double-buffered weights
    fn = _make_call(B, Sp, H, Hh, S, tb, x_dtype, x_dtype,
                    False, vmem_limit, weight_nbytes)
    return fn(*args)


def reference(x, w1, b1, w2, b2, wp, bp):
    h = jnp.tanh(x @ w1 + b1)                 # (B, S, H//2)
    scores = h @ w2 + b2                      # (B, S, 1)
    attn_w = jax.nn.softmax(scores, axis=1)
    attended = jnp.sum(x * attn_w, axis=1)    # (B, H)
    skip = x.mean(axis=1) @ wp + bp[0]        # (B, H)
    return attended + skip


if __name__ == "__main__":
    B, S, H = 2, 8, 32
    Hh = H // 2

    key = jax.random.PRNGKey(0)
    kx, k1, kb1, k2, kb2, kp, kbp = jax.random.split(key, 7)

    x = jax.random.normal(kx, (B, S, H), dtype=jnp.float32)

    # Parameters stored as (in, out); y = x @ W + b  (== nn.Linear with W = weight.T).
    w1 = jax.random.normal(k1, (H, Hh), dtype=jnp.float32) * 0.1
    b1 = jax.random.normal(kb1, (1, Hh), dtype=jnp.float32) * 0.1
    w2 = jax.random.normal(k2, (Hh, 1), dtype=jnp.float32) * 0.1
    b2 = jax.random.normal(kb2, (1, 1), dtype=jnp.float32) * 0.1
    wp = jax.random.normal(kp, (H, H), dtype=jnp.float32) * 0.1
    bp = jax.random.normal(kbp, (1, H), dtype=jnp.float32) * 0.1

    out = attention_module(x, w1, b1, w2, b2, wp, bp)
    out = jax.block_until_ready(out)
    assert out.shape == (B, H)

    ref = reference(x, w1, b1, w2, b2, wp, bp)
    # tolerance covers the EUP approximate reciprocal used for the softmax
    # normalization; everything else accumulates in f32.
    assert jnp.allclose(out, ref, atol=5e-3, rtol=5e-3), (out, ref)

    # bf16 inputs (recommended deployment dtype on all generations: the kernel is
    # HBM-bound on streaming x, so bf16 halves the bytes; accumulation and softmax
    # stats stay f32 in-kernel).  This also exercises the S-padding + score-masking
    # branch, since the bf16 sublane pack (16) exceeds S = 8.
    bf = jnp.bfloat16
    out_bf16 = attention_module(x.astype(bf), w1.astype(bf), b1.astype(bf),
                                w2.astype(bf), b2, wp.astype(bf), bp.astype(bf))
    out_bf16 = jax.block_until_ready(out_bf16)
    assert out_bf16.shape == (B, H)
    assert jnp.allclose(out_bf16.astype(jnp.float32), ref, atol=0.25, rtol=0.1)

    print("KERNEL_OK")
</pallas_src>

<mosaic_0001>
module attributes {stable_mosaic.version = 11 : i64} {
  func.func @attention_kernel(%arg0: i32, %arg1: memref<2x8x32xf32, #tpu.memory_space<vmem>>, %arg2: memref<32x16xf32, #tpu.memory_space<vmem>>, %arg3: memref<1x16xf32, #tpu.memory_space<vmem>>, %arg4: memref<1x16xf32, #tpu.memory_space<vmem>>, %arg5: memref<1x1xf32, #tpu.memory_space<smem>>, %arg6: memref<32x32xf32, #tpu.memory_space<vmem>>, %arg7: memref<1x32xf32, #tpu.memory_space<vmem>>, %arg8: memref<2x32xf32, #tpu.memory_space<vmem>>) attributes {dimension_semantics = [#tpu.dimension_semantics<parallel>], iteration_bounds = array<i64: 1>, scalar_prefetch = 0 : i64, scratch_operands = 0 : i64, tpu.core_type = #tpu.core_type<tc>, window_params = [{transform_indices = @transform_0, window_bounds = array<i64: 2, 8, 32>}, {pipeline_mode = #tpu.pipeline_mode<synchronous>, transform_indices = @transform_1, window_bounds = array<i64: 32, 16>}, {pipeline_mode = #tpu.pipeline_mode<synchronous>, transform_indices = @transform_2, window_bounds = array<i64: 1, 16>}, {pipeline_mode = #tpu.pipeline_mode<synchronous>, transform_indices = @transform_3, window_bounds = array<i64: 1, 16>}, {transform_indices = @transform_4, window_bounds = array<i64: 1, 1>}, {pipeline_mode = #tpu.pipeline_mode<synchronous>, transform_indices = @transform_5, window_bounds = array<i64: 32, 32>}, {pipeline_mode = #tpu.pipeline_mode<synchronous>, transform_indices = @transform_6, window_bounds = array<i64: 1, 32>}, {transform_indices = @transform_7, window_bounds = array<i64: 2, 32>}]} {
    %c0 = arith.constant 0 : index
    %c0_0 = arith.constant 0 : index
    %c0_1 = arith.constant 0 : index
    %0 = vector.load %arg1[%c0, %c0_0, %c0_1] : memref<2x8x32xf32, #tpu.memory_space<vmem>>, vector<2x8x32xf32>
    %1 = vector.shape_cast %0 : vector<2x8x32xf32> to vector<16x32xf32>
    %c0_2 = arith.constant 0 : index
    %c0_3 = arith.constant 0 : index
    %2 = vector.load %arg2[%c0_2, %c0_3] : memref<32x16xf32, #tpu.memory_space<vmem>>, vector<32x16xf32>
    %cst = arith.constant dense<0.000000e+00> : vector<16x16xf32>
    %3 = tpu.matmul %1, %2, %cst {dimension_numbers = #tpu.dot_dimension_numbers<[1], [0], [0], [1], [0, 0, 1, 1], [], []>} : vector<16x32xf32>, vector<32x16xf32>, vector<16x16xf32> -> vector<16x16xf32>
    %c0_4 = arith.constant 0 : index
    %c0_5 = arith.constant 0 : index
    %4 = vector.load %arg3[%c0_4, %c0_5] : memref<1x16xf32, #tpu.memory_space<vmem>>, vector<1x16xf32>
    %5 = vector.broadcast %4 : vector<1x16xf32> to vector<16x16xf32>
    %6 = arith.addf %3, %5 : vector<16x16xf32>
    %7 = math.tanh %6 : vector<16x16xf32>
    %8 = vector.shape_cast %7 : vector<16x16xf32> to vector<2x8x16xf32>
    %c0_6 = arith.constant 0 : index
    %c0_7 = arith.constant 0 : index
    %9 = vector.load %arg4[%c0_6, %c0_7] : memref<1x16xf32, #tpu.memory_space<vmem>>, vector<1x16xf32>
    %10 = vector.shape_cast %9 : vector<1x16xf32> to vector<1x1x16xf32>
    %11 = vector.broadcast %10 : vector<1x1x16xf32> to vector<2x8x16xf32>
    %12 = arith.mulf %8, %11 : vector<2x8x16xf32>
    %cst_8 = arith.constant dense<0.000000e+00> : vector<2x8xf32>
    %13 = vector.multi_reduction <add>, %12, %cst_8 [2] : vector<2x8x16xf32> to vector<2x8xf32>
    %c0_9 = arith.constant 0 : index
    %c0_10 = arith.constant 0 : index
    %14 = memref.load %arg5[%c0_9, %c0_10] : memref<1x1xf32, #tpu.memory_space<smem>>
    %15 = vector.broadcast %14 : f32 to vector<2x8xf32>
    %16 = arith.addf %13, %15 : vector<2x8xf32>
    %cst_11 = arith.constant dense<0xFF800000> : vector<2xf32>
    %17 = vector.multi_reduction <maximumf>, %16, %cst_11 [1] : vector<2x8xf32> to vector<2xf32>
    %18 = vector.shape_cast %17 : vector<2xf32> to vector<2x1xf32>
    %19 = vector.broadcast %18 : vector<2x1xf32> to vector<2x8xf32>
    %20 = arith.subf %16, %19 : vector<2x8xf32>
    %21 = math.exp %20 : vector<2x8xf32>
    %cst_12 = arith.constant dense<0.000000e+00> : vector<2xf32>
    %22 = vector.multi_reduction <add>, %21, %cst_12 [1] : vector<2x8xf32> to vector<2xf32>
    %23 = vector.shape_cast %22 : vector<2xf32> to vector<2x1xf32>
    %24 = tpu.reciprocal %23 {approx = true} : vector<2x1xf32> -> vector<2x1xf32>
    %25 = vector.shape_cast %21 : vector<2x8xf32> to vector<2x1x8xf32>
    %cst_13 = arith.constant 1.000000e+00 : f32
    %26 = vector.broadcast %cst_13 : f32 to vector<2x1x8xf32>
    %27 = tpu.concatenate %25, %26 in 1 : vector<2x1x8xf32>, vector<2x1x8xf32> -> vector<2x2x8xf32>
    "tpu.trace_start"() <{level = 10 : i32, message = "bks,bsh->bkh"}> : () -> ()
    %cst_14 = arith.constant dense<0.000000e+00> : vector<2x2x32xf32>
    %28 = tpu.matmul %27, %0, %cst_14 {dimension_numbers = #tpu.dot_dimension_numbers<[2], [1], [1], [2], [0, 0, 0, 1, 1, 2], [0], [0]>} : vector<2x2x8xf32>, vector<2x8x32xf32>, vector<2x2x32xf32> -> vector<2x2x32xf32>
    "tpu.trace_stop"() : () -> ()
    %29 = vector.extract_strided_slice %28 {offsets = [0, 0, 0], sizes = [2, 1, 32], strides = [1, 1, 1]} : vector<2x2x32xf32> to vector<2x1x32xf32>
    %30 = vector.shape_cast %29 : vector<2x1x32xf32> to vector<2x32xf32>
    %31 = vector.broadcast %24 : vector<2x1xf32> to vector<2x32xf32>
    %32 = arith.mulf %30, %31 : vector<2x32xf32>
    %33 = vector.extract_strided_slice %28 {offsets = [0, 1, 0], sizes = [2, 1, 32], strides = [1, 1, 1]} : vector<2x2x32xf32> to vector<2x1x32xf32>
    %34 = vector.shape_cast %33 : vector<2x1x32xf32> to vector<2x32xf32>
    %cst_15 = arith.constant 1.250000e-01 : f32
    %35 = vector.broadcast %cst_15 : f32 to vector<2x32xf32>
    %36 = arith.mulf %34, %35 : vector<2x32xf32>
    %c0_16 = arith.constant 0 : index
    %c0_17 = arith.constant 0 : index
    %37 = vector.load %arg6[%c0_16, %c0_17] : memref<32x32xf32, #tpu.memory_space<vmem>>, vector<32x32xf32>
    %cst_18 = arith.constant dense<0.000000e+00> : vector<2x32xf32>
    %38 = tpu.matmul %36, %37, %cst_18 {dimension_numbers = #tpu.dot_dimension_numbers<[1], [0], [0], [1], [0, 0, 1, 1], [], []>} : vector<2x32xf32>, vector<32x32xf32>, vector<2x32xf32> -> vector<2x32xf32>
    %c0_19 = arith.constant 0 : index
    %c0_20 = arith.constant 0 : index
    %39 = vector.load %arg7[%c0_19, %c0_20] : memref<1x32xf32, #tpu.memory_space<vmem>>, vector<1x32xf32>
    %40 = vector.broadcast %39 : vector<1x32xf32> to vector<2x32xf32>
    %41 = arith.addf %38, %40 : vector<2x32xf32>
    %42 = arith.addf %32, %41 : vector<2x32xf32>
    %c0_21 = arith.constant 0 : index
    %c0_22 = arith.constant 0 : index
    %43 = vector.load %arg8[%c0_21, %c0_22] : memref<2x32xf32, #tpu.memory_space<vmem>>, vector<2x32xf32>
    tpu.vector_store %arg8[%c0_21, %c0_22], %42 {strides = array<i32>} : memref<2x32xf32, #tpu.memory_space<vmem>>, vector<2x32xf32>,
    return
  }
  func.func @transform_0(%arg0: i32) -> (i32, i32, i32) {
    %c0_i32 = arith.constant 0 : i32
    %c0_i32_0 = arith.constant 0 : i32
    %c0_i32_1 = arith.constant 0 : i32
    return %arg0, %c0_i32, %c0_i32_0 : i32, i32, i32
  }
  func.func @transform_1(%arg0: i32) -> (i32, i32) {
    %c0_i32 = arith.constant 0 : i32
    %c0_i32_0 = arith.constant 0 : i32
    %c0_i32_1 = arith.constant 0 : i32
    return %c0_i32, %c0_i32_0 : i32, i32
  }
  func.func @transform_2(%arg0: i32) -> (i32, i32) {
    %c0_i32 = arith.constant 0 : i32
    %c0_i32_0 = arith.constant 0 : i32
    %c0_i32_1 = arith.constant 0 : i32
    return %c0_i32, %c0_i32_0 : i32, i32
  }
  func.func @transform_3(%arg0: i32) -> (i32, i32) {
    %c0_i32 = arith.constant 0 : i32
    %c0_i32_0 = arith.constant 0 : i32
    %c0_i32_1 = arith.constant 0 : i32
    return %c0_i32, %c0_i32_0 : i32, i32
  }
  func.func @transform_4(%arg0: i32) -> (i32, i32) {
    %c0_i32 = arith.constant 0 : i32
    %c0_i32_0 = arith.constant 0 : i32
    %c0_i32_1 = arith.constant 0 : i32
    return %c0_i32, %c0_i32_0 : i32, i32
  }
  func.func @transform_5(%arg0: i32) -> (i32, i32) {
    %c0_i32 = arith.constant 0 : i32
    %c0_i32_0 = arith.constant 0 : i32
    %c0_i32_1 = arith.constant 0 : i32
    return %c0_i32, %c0_i32_0 : i32, i32
  }
  func.func @transform_6(%arg0: i32) -> (i32, i32) {
    %c0_i32 = arith.constant 0 : i32
    %c0_i32_0 = arith.constant 0 : i32
    %c0_i32_1 = arith.constant 0 : i32
    return %c0_i32, %c0_i32_0 : i32, i32
  }
  func.func @transform_7(%arg0: i32) -> (i32, i32) {
    %c0_i32 = arith.constant 0 : i32
    %c0_i32_0 = arith.constant 0 : i32
    return %arg0, %c0_i32 : i32, i32
  }
}

module attributes {stable_mosaic.version = 11 : i64} {
  func.func @attention_kernel(%arg0: i32, %arg1: memref<2x8x32xf32, #tpu.memory_space<vmem>>, %arg2: memref<32x16xf32, #tpu.memory_space<vmem>>, %arg3: memref<1x16xf32, #tpu.memory_space<vmem>>, %arg4: memref<1x16xf32, #tpu.memory_space<vmem>>, %arg5: memref<1x1xf32, #tpu.memory_space<smem>>, %arg6: memref<32x32xf32, #tpu.memory_space<vmem>>, %arg7: memref<1x32xf32, #tpu.memory_space<vmem>>, %arg8: memref<2x32xf32, #tpu.memory_space<vmem>>) attributes {dimension_semantics = [#tpu.dimension_semantics<parallel>], iteration_bounds = array<i64: 1>, scalar_prefetch = 0 : i64, scratch_operands = 0 : i64, tpu.core_type = #tpu.core_type<tc>, window_params = [{transform_indices = @transform_0, window_bounds = array<i64: 2, 8, 32>}, {pipeline_mode = #tpu.pipeline_mode<synchronous>, transform_indices = @transform_1, window_bounds = array<i64: 32, 16>}, {pipeline_mode = #tpu.pipeline_mode<synchronous>, transform_indices = @transform_2, window_bounds = array<i64: 1, 16>}, {pipeline_mode = #tpu.pipeline_mode<synchronous>, transform_indices = @transform_3, window_bounds = array<i64: 1, 16>}, {transform_indices = @transform_4, window_bounds = array<i64: 1, 1>}, {pipeline_mode = #tpu.pipeline_mode<synchronous>, transform_indices = @transform_5, window_bounds = array<i64: 32, 32>}, {pipeline_mode = #tpu.pipeline_mode<synchronous>, transform_indices = @transform_6, window_bounds = array<i64: 1, 32>}, {transform_indices = @transform_7, window_bounds = array<i64: 2, 32>}]} {
    %c0 = arith.constant 0 : index
    %c0_0 = arith.constant 0 : index
    %c0_1 = arith.constant 0 : index
    %0 = vector.load %arg1[%c0, %c0_0, %c0_1] : memref<2x8x32xf32, #tpu.memory_space<vmem>>, vector<2x8x32xf32>
    %1 = vector.shape_cast %0 : vector<2x8x32xf32> to vector<16x32xf32>
    %c0_2 = arith.constant 0 : index
    %c0_3 = arith.constant 0 : index
    %2 = vector.load %arg2[%c0_2, %c0_3] : memref<32x16xf32, #tpu.memory_space<vmem>>, vector<32x16xf32>
    %cst = arith.constant dense<0.000000e+00> : vector<16x16xf32>
    %3 = tpu.matmul %1, %2, %cst {dimension_numbers = #tpu.dot_dimension_numbers<[1], [0], [0], [1], [0, 0, 1, 1], [], []>} : vector<16x32xf32>, vector<32x16xf32>, vector<16x16xf32> -> vector<16x16xf32>
    %c0_4 = arith.constant 0 : index
    %c0_5 = arith.constant 0 : index
    %4 = vector.load %arg3[%c0_4, %c0_5] : memref<1x16xf32, #tpu.memory_space<vmem>>, vector<1x16xf32>
    %5 = vector.broadcast %4 : vector<1x16xf32> to vector<16x16xf32>
    %6 = arith.addf %3, %5 : vector<16x16xf32>
    %7 = math.tanh %6 : vector<16x16xf32>
    %8 = vector.shape_cast %7 : vector<16x16xf32> to vector<2x8x16xf32>
    %c0_6 = arith.constant 0 : index
    %c0_7 = arith.constant 0 : index
    %9 = vector.load %arg4[%c0_6, %c0_7] : memref<1x16xf32, #tpu.memory_space<vmem>>, vector<1x16xf32>
    %10 = vector.shape_cast %9 : vector<1x16xf32> to vector<1x1x16xf32>
    %11 = vector.broadcast %10 : vector<1x1x16xf32> to vector<2x8x16xf32>
    %12 = arith.mulf %8, %11 : vector<2x8x16xf32>
    %cst_8 = arith.constant dense<0.000000e+00> : vector<2x8xf32>
    %13 = vector.multi_reduction <add>, %12, %cst_8 [2] : vector<2x8x16xf32> to vector<2x8xf32>
    %c0_9 = arith.constant 0 : index
    %c0_10 = arith.constant 0 : index
    %14 = memref.load %arg5[%c0_9, %c0_10] : memref<1x1xf32, #tpu.memory_space<smem>>
    %15 = vector.broadcast %14 : f32 to vector<2x8xf32>
    %16 = arith.addf %13, %15 : vector<2x8xf32>
    %cst_11 = arith.constant dense<0xFF800000> : vector<2xf32>
    %17 = vector.multi_reduction <maximumf>, %16, %cst_11 [1] : vector<2x8xf32> to vector<2xf32>
    %18 = vector.shape_cast %17 : vector<2xf32> to vector<2x1xf32>
    %19 = vector.broadcast %18 : vector<2x1xf32> to vector<2x8xf32>
    %20 = arith.subf %16, %19 : vector<2x8xf32>
    %21 = math.exp %20 : vector<2x8xf32>
    %cst_12 = arith.constant dense<0.000000e+00> : vector<2xf32>
    %22 = vector.multi_reduction <add>, %21, %cst_12 [1] : vector<2x8xf32> to vector<2xf32>
    %23 = vector.shape_cast %22 : vector<2xf32> to vector<2x1xf32>
    %24 = tpu.reciprocal %23 {approx = true} : vector<2x1xf32> -> vector<2x1xf32>
    %25 = vector.shape_cast %21 : vector<2x8xf32> to vector<2x1x8xf32>
    %cst_13 = arith.constant 1.000000e+00 : f32
    %26 = vector.broadcast %cst_13 : f32 to vector<2x1x8xf32>
    %27 = tpu.concatenate %25, %26 in 1 : vector<2x1x8xf32>, vector<2x1x8xf32> -> vector<2x2x8xf32>
    "tpu.trace_start"() <{level = 10 : i32, message = "bks,bsh->bkh"}> : () -> ()
    %cst_14 = arith.constant dense<0.000000e+00> : vector<2x2x32xf32>
    %28 = tpu.matmul %27, %0, %cst_14 {dimension_numbers = #tpu.dot_dimension_numbers<[2], [1], [1], [2], [0, 0, 0, 1, 1, 2], [0], [0]>} : vector<2x2x8xf32>, vector<2x8x32xf32>, vector<2x2x32xf32> -> vector<2x2x32xf32>
    "tpu.trace_stop"() : () -> ()
    %29 = vector.extract_strided_slice %28 {offsets = [0, 0, 0], sizes = [2, 1, 32], strides = [1, 1, 1]} : vector<2x2x32xf32> to vector<2x1x32xf32>
    %30 = vector.shape_cast %29 : vector<2x1x32xf32> to vector<2x32xf32>
    %31 = vector.broadcast %24 : vector<2x1xf32> to vector<2x32xf32>
    %32 = arith.mulf %30, %31 : vector<2x32xf32>
    %33 = vector.extract_strided_slice %28 {offsets = [0, 1, 0], sizes = [2, 1, 32], strides = [1, 1, 1]} : vector<2x2x32xf32> to vector<2x1x32xf32>
    %34 = vector.shape_cast %33 : vector<2x1x32xf32> to vector<2x32xf32>
    %cst_15 = arith.constant 1.250000e-01 : f32
    %35 = vector.broadcast %cst_15 : f32 to vector<2x32xf32>
    %36 = arith.mulf %34, %35 : vector<2x32xf32>
    %c0_16 = arith.constant 0 : index
    %c0_17 = arith.constant 0 : index
    %37 = vector.load %arg6[%c0_16, %c0_17] : memref<32x32xf32, #tpu.memory_space<vmem>>, vector<32x32xf32>
    %cst_18 = arith.constant dense<0.000000e+00> : vector<2x32xf32>
    %38 = tpu.matmul %36, %37, %cst_18 {dimension_numbers = #tpu.dot_dimension_numbers<[1], [0], [0], [1], [0, 0, 1, 1], [], []>} : vector<2x32xf32>, vector<32x32xf32>, vector<2x32xf32> -> vector<2x32xf32>
    %c0_19 = arith.constant 0 : index
    %c0_20 = arith.constant 0 : index
    %39 = vector.load %arg7[%c0_19, %c0_20] : memref<1x32xf32, #tpu.memory_space<vmem>>, vector<1x32xf32>
    %40 = vector.broadcast %39 : vector<1x32xf32> to vector<2x32xf32>
    %41 = arith.addf %38, %40 : vector<2x32xf32>
    %42 = arith.addf %32, %41 : vector<2x32xf32>
    %c0_21 = arith.constant 0 : index
    %c0_22 = arith.constant 0 : index
    %43 = vector.load %arg8[%c0_21, %c0_22] : memref<2x32xf32, #tpu.memory_space<vmem>>, vector<2x32xf32>
    tpu.vector_store %arg8[%c0_21, %c0_22], %42 {strides = array<i32>} : memref<2x32xf32, #tpu.memory_space<vmem>>, vector<2x32xf32>,
    return
  }
  func.func @transform_0(%arg0: i32) -> (i32, i32, i32) {
    %c0_i32 = arith.constant 0 : i32
    %c0_i32_0 = arith.constant 0 : i32
    %c0_i32_1 = arith.constant 0 : i32
    return %arg0, %c0_i32, %c0_i32_0 : i32, i32, i32
  }
  func.func @transform_1(%arg0: i32) -> (i32, i32) {
    %c0_i32 = arith.constant 0 : i32
    %c0_i32_0 = arith.constant 0 : i32
    %c0_i32_1 = arith.constant 0 : i32
    return %c0_i32, %c0_i32_0 : i32, i32
  }
  func.func @transform_2(%arg0: i32) -> (i32, i32) {
    %c0_i32 = arith.constant 0 : i32
    %c0_i32_0 = arith.constant 0 : i32
    %c0_i32_1 = arith.constant 0 : i32
    return %c0_i32, %c0_i32_0 : i32, i32
  }
  func.func @transform_3(%arg0: i32) -> (i32, i32) {
    %c0_i32 = arith.constant 0 : i32
    %c0_i32_0 = arith.constant 0 : i32
    %c0_i32_1 = arith.constant 0 : i32
    return %c0_i32, %c0_i32_0 : i32, i32
  }
  func.func @transform_4(%arg0: i32) -> (i32, i32) {
    %c0_i32 = arith.constant 0 : i32
    %c0_i32_0 = arith.constant 0 : i32
    %c0_i32_1 = arith.constant 0 : i32
    return %c0_i32, %c0_i32_0 : i32, i32
  }
  func.func @transform_5(%arg0: i32) -> (i32, i32) {
    %c0_i32 = arith.constant 0 : i32
    %c0_i32_0 = arith.constant 0 : i32
    %c0_i32_1 = arith.constant 0 : i32
    return %c0_i32, %c0_i32_0 : i32, i32
  }
  func.func @transform_6(%arg0: i32) -> (i32, i32) {
    %c0_i32 = arith.constant 0 : i32
    %c0_i32_0 = arith.constant 0 : i32
    %c0_i32_1 = arith.constant 0 : i32
    return %c0_i32, %c0_i32_0 : i32, i32
  }
  func.func @transform_7(%arg0: i32) -> (i32, i32) {
    %c0_i32 = arith.constant 0 : i32
    %c0_i32_0 = arith.constant 0 : i32
    return %arg0, %c0_i32 : i32, i32
  }
}

</mosaic_0001>

<llo_original>
// kernel: tpu_custom_call.1
$region0: #{tpu_custom_call.1}
  #allocation0 [shape = 'u32[]', space=smem, size = 0x4, offset = 0x4, fixed_abs, tag = 'smem constant byte address 0x4 - core index']
  #allocation1 [shape = 'u32[144,128]{1,0:T(1,128)}', space=vmem, size = 0x12000, scoped, tag = 'internal scratch']
  #allocation2 [shape = 'f32[1,1]{1,0:T(1,128)S(6)}', space=smem, size = 0x200, scoped, tag = 'scoped memory for tpu_custom_call.1']
  %s0 = inlined_call_operand.vmem [shape: f32[2,8,32], index: 0, kind: input, shape index: {}]
  %s1 = inlined_call_operand.vmem [shape: f32[32,16], index: 1, kind: input, shape index: {}]
  %s2 = inlined_call_operand.vmem [shape: f32[1,16], index: 2, kind: input, shape index: {}]
  %s3 = inlined_call_operand.vmem [shape: f32[1,16], index: 3, kind: input, shape index: {}]
  %s4 = inlined_call_operand.<no memory space> [shape: f32[1,1], index: 4, kind: input, shape index: {}]
  %s5 = inlined_call_operand.vmem [shape: f32[32,32], index: 5, kind: input, shape index: {}]
  %s6 = inlined_call_operand.vmem [shape: f32[1,32], index: 6, kind: input, shape index: {}]
  %s7 = inlined_call_operand.hbm [shape: f32[2,32], index: 7, kind: output, shape index: {}]
  %s8 = sld [smem:[#allocation0]]
  $region38: #{tpu_custom_call.1} parent=0
    _
  %s10 = ssub.s32 1, %s8
  %s11 = scalar_select 0, %s10, %s8
  %12 = sst [smem:[#allocation2]] %s4
  $region1: #{tpu_custom_call.1} parent=0
    #allocation3 [shape = 'u8[1024]{0}', space=vmem, size = 0x400, scoped, tag = 'output window, operand 0, single buffered']
    #allocation4 [shape = 's32[1]{0}', space=sflag, size = 0x4, scoped, tag = 'scoped memory for tpu_custom_call.1']
    %13 = vsyncpa [#allocation4], 0
    // Predicated region
    $region2: #{tpu_custom_call.1} parent=1 // pred_check
      _
    $region3: #{tpu_custom_call.1} parent=1 // pred_check_branch
      %15 = sbr.rel (0) target = $region5
    $region4: #{tpu_custom_call.1} parent=1 // pred_region
      _
    $region5: #{tpu_custom_call.1} parent=1 // pred_fallthru
      _
    // Predicated region
    $region6: #{tpu_custom_call.1} parent=1 // pred_check
      _
    $region7: #{tpu_custom_call.1} parent=1 // pred_check_branch
      %17 = sbr.rel (0) target = $region9
    $region8: #{tpu_custom_call.1} parent=1 // pred_region
      _
    $region9: #{tpu_custom_call.1} parent=1 // pred_fallthru
      _
    // Predicated region
    $region10: #{tpu_custom_call.1} parent=1 // pred_check
      _
    $region11: #{tpu_custom_call.1} parent=1 // pred_check_branch
      %19 = sbr.rel (0) target = $region13
    $region12: #{tpu_custom_call.1} parent=1 // pred_region
      _
    $region13: #{tpu_custom_call.1} parent=1 // pred_fallthru
      _
    // Predicated region
    $region14: #{tpu_custom_call.1} parent=1 // pred_check
      _
    $region15: #{tpu_custom_call.1} parent=1 // pred_check_branch
      %21 = sbr.rel (0) target = $region17
    $region16: #{tpu_custom_call.1} parent=1 // pred_region
      _
    $region17: #{tpu_custom_call.1} parent=1 // pred_fallthru
      _
    // Predicated region
    $region18: #{tpu_custom_call.1} parent=1 // pred_check
      _
    $region19: #{tpu_custom_call.1} parent=1 // pred_check_branch
      %23 = sbr.rel (0) target = $region21
    $region20: #{tpu_custom_call.1} parent=1 // pred_region
      _
    $region21: #{tpu_custom_call.1} parent=1 // pred_fallthru
      _
    // Predicated region
    $region22: #{tpu_custom_call.1} parent=1 // pred_check
      _
    $region23: #{tpu_custom_call.1} parent=1 // pred_check_branch
      %25 = sbr.rel (0) target = $region25
    $region24: #{tpu_custom_call.1} parent=1 // pred_region
      _
    $region25: #{tpu_custom_call.1} parent=1 // pred_fallthru
      _
    // Predicated region
    $region26: #{tpu_custom_call.1} parent=1 // pred_check
      _
    $region27: #{tpu_custom_call.1} parent=1 // pred_check_branch
      %27 = sbr.rel (0) target = $region29
    $region28: #{tpu_custom_call.1} parent=1 // pred_region
      _
    $region29: #{tpu_custom_call.1} parent=1 // pred_fallthru
      _
    %v28 = vld [vmem:[%s0] sm:$0xff]
    %v29 = vld [vmem:[%s0 + $0x8] sm:$0xff]
    %v30 = vld [vmem:[%s1] sm:$0xff]
    %v31 = vld [vmem:[%s1 + $0x8] sm:$0xff]
    %v32 = vld [vmem:[%s1 + $0x10] sm:$0xff]
    %v33 = vld [vmem:[%s1 + $0x18] sm:$0xff]
    %v34 = vld [vmem:[%s2] sm:$0x1]
    %v36 = vlaneseq
    %v37 = vshrl.u32 %v36, 7
    %v38 = vsub.s32 0, %v37
    %v39 = vrot.slane %v34, %v38
    %vm41 = vcmask 261120
    %v43 = vsel %vm41, %v28, 0
    %v46 = vsel %vm41, %v29, 0
    %48 = vmatprep.subr.mxu0 0.0
    %49 = vmatpush1.msra.mxu0 0.0
    %50 = vmatprep.subr.mxu0 0.0
    %51 = vmatpush1.msra.mxu0 0.0
    %52 = vmatprep.subr.mxu0 0.0
    %53 = vmatpush1.msra.mxu0 0.0
    %54 = vmatprep.subr.mxu0 0.0
    %55 = vmatpush1.msra.mxu0 0.0
    %56 = vmatprep.subr.mxu0 0.0
    %57 = vmatpush1.msra.mxu0 0.0
    %58 = vmatprep.subr.mxu0 0.0
    %59 = vmatpush1.msra.mxu0 0.0
    %60 = vmatprep.subr.mxu0 0.0
    %61 = vmatpush1.msra.mxu0 0.0
    %62 = vmatprep.subr.mxu0 0.0
    %63 = vmatpush1.msra.mxu0 0.0
    %64 = vmatprep.subr.mxu0 0.0
    %65 = vmatpush1.msra.mxu0 0.0
    %66 = vmatprep.subr.mxu0 0.0
    %67 = vmatpush1.msra.mxu0 0.0
    %68 = vmatprep.subr.mxu0 0.0
    %69 = vmatpush1.msra.mxu0 0.0
    %70 = vmatprep.subr.mxu0 0.0
    %71 = vmatpush1.msra.mxu0 0.0
    %72 = vmatprep.subr.mxu0 0.0
    %73 = vmatpush1.msra.mxu0 %v33
    %74 = vmatprep.subr.mxu0 0.0
    %75 = vmatpush1.msra.mxu0 %v32
    %76 = vmatprep.subr.mxu0 0.0
    %77 = vmatpush1.msra.mxu0 %v31
    %78 = vmatprep.subr.mxu0 0.0
    %79 = vmatpush1.msra.mxu0 %v30
    %80 = vmatprep.subr.mxu0 0.0
    %81 = vmatpush2.msra.mxu0 0.0
    %82 = vmatprep.subr.mxu0 0.0
    %83 = vmatpush2.msra.mxu0 0.0
    %84 = vmatprep.subr.mxu0 0.0
    %85 = vmatpush2.msra.mxu0 0.0
    %86 = vmatprep.subr.mxu0 0.0
    %87 = vmatpush2.msra.mxu0 0.0
    %88 = vmatprep.subr.mxu0 0.0
    %89 = vmatpush2.msra.mxu0 0.0
    %90 = vmatprep.subr.mxu0 0.0
    %91 = vmatpush2.msra.mxu0 0.0
    %92 = vmatprep.subr.mxu0 0.0
    %93 = vmatpush2.msra.mxu0 0.0
    %94 = vmatprep.subr.mxu0 0.0
    %95 = vmatpush2.msra.mxu0 0.0
    %96 = vmatprep.subr.mxu0 0.0
    %97 = vmatpush2.msra.mxu0 0.0
    %98 = vmatprep.subr.mxu0 0.0
    %99 = vmatpush2.msra.mxu0 0.0
    %100 = vmatprep.subr.mxu0 0.0
    %101 = vmatpush2.msra.mxu0 0.0
    %102 = vmatprep.subr.mxu0 0.0
    %103 = vmatpush2.msra.mxu0 0.0
    %104 = vmatprep.subr.mxu0 0.0
    %105 = vmatpush2.msra.mxu0 0.0
    %106 = vmatprep.subr.mxu0 0.0
    %107 = vmatpush2.msra.mxu0 0.0
    %108 = vmatprep.subr.mxu0 0.0
    %109 = vmatpush2.msra.mxu0 0.0
    %110 = vmatprep.subr.mxu0 0.0
    %111 = vmatpush2.msra.mxu0 0.0
    %112 = vmatprep.mubr.f32.mxu0 0.0
    %113 = vmatmul.mubr.f32.gmra.mxu0 %v43
    %v114 = vpop.f32.mrf.mxu0
    %v115 = vadd.f32 %v39, %v114
    %v116 = vpop.f32.mrf.mxu0
    %117 = vmatprep.mubr.f32.mxu0 0.0
    %118 = vmatmul.mubr.f32.gmra.mxu0 %v46
    %v119 = vpop.f32.mrf.mxu0
    %v120 = vadd.f32 %v39, %v119
    %v121 = vpop.f32.mrf.mxu0
    %122 = vdwg.mxu0
    %v123 = vtanh.pop %v115
    %v124 = vtanh.pop %v120
    %v125 = vld [vmem:[%s3] sm:$0x1]
    %v127 = vlaneseq
    %v128 = vshrl.u32 %v127, 7
    %v129 = vsub.s32 0, %v128
    %v130 = vrot.slane %v125, %v129
    %v132 = vmul.f32 %v123, %v130
    %v133 = vmul.f32 %v124, %v130
    %vm134 = vcmask 130048
    %v135 = vsel %vm134, %v132, 0.0
    %136 = vadd.xlane.f32.xlu0 %v135
    %v137 = vpop.xlane.xlu0 %136
    %v138 = vsel %vm134, %v133, 0.0
    %139 = vadd.xlane.f32.xlu0 %v138
    %v140 = vpop.xlane.xlu0 %139
    %s141 = sld [smem:[#allocation2]]
    %v142 = vstv %s141
    %v143 = vadd.f32 %v137, %v142
    %v144 = vadd.f32 %v140, %v142
    %v147 = vlaneseq
    %v148 = vand.u32 %v147, 127
    %v149 = vlaneseq
    %v150 = vshrl.u32 %v149, 7
    %v151 = vsub.s32 %v148, %v150
    %v152 = vrot.slane %v143, %v151
    %v153 = vlaneseq
    %v154 = vshrl.u32 %v153, 7
    %v155 = vsub.s32 %v148, %v154
    %v156 = vrot.slane %v144, %v155
    %vm157 = vcmask 1041409
    %v158 = vsel %vm157, %v156, %v152
    %vm160 = vcmask 58368
    %v161 = vsel %vm160, %v158, -inf
    %162 = vmax.xlane.f32.xlu0 %v161
    %v163 = vpop.xlane.xlu0 %162
    %v165 = vlaneseq
    %v166 = vshrl.u32 %v165, 7
    %v167 = vsub.s32 0, %v166
    %v168 = vrot.slane %v163, %v167
    %v169 = vlaneseq
    %v170 = vshrl.u32 %v169, 7
    %v171 = vsub.s32 1, %v170
    %v172 = vrot.slane %v163, %v171
    %v175 = vsub.f32 %v143, %v168
    %v176 = vsub.f32 %v144, %v172
    %v177 = vmul.f32 %v175, 1.442695
    %v178 = vpow.pop %v177
    %v179 = vmul.f32 %v176, 1.442695
    %v180 = vpow.pop %v179
    %183 = vset.pattern.permute.xlu0 0
    %184 = vperm.xlu0 %183, %v178
    %v185 = vpop.permute.xlu0 %184
    %186 = vset.pattern.permute.xlu0 0
    %187 = vperm.xlu0 %186, %v180
    %v188 = vpop.permute.xlu0 %187
    %v189 = vlaneseq
    %v190 = vshrl.u32 %v189, 7
    %v191 = vsub.s32 %v148, %v190
    %v192 = vrot.slane %v185, %v191
    %v193 = vlaneseq
    %v194 = vshrl.u32 %v193, 7
    %v195 = vsub.s32 %v148, %v194
    %v196 = vrot.slane %v188, %v195
    %v197 = vsel %vm157, %v196, %v192
    %v199 = vsel %vm160, %v197, 0.0
    %200 = vadd.xlane.f32.xlu0 %v199
    %v201 = vpop.xlane.xlu0 %200
    %v202 = vrcp.pop %v201
    %vm205 = vcmask 1040384
    %v206 = vsel %vm205, %v192, 1.0
    %v207 = vsel %vm205, %v196, 1.0
    %vm208 = vcmask 64512
    %v210 = vsel %vm208, %v206, 0
    %212 = vmatprep.subr.mxu0 0.0
    %213 = vmatpush1.msra.mxu0 0.0
    %214 = vmatprep.subr.mxu0 0.0
    %215 = vmatpush1.msra.mxu0 0.0
    %216 = vmatprep.subr.mxu0 0.0
    %217 = vmatpush1.msra.mxu0 0.0
    %218 = vmatprep.subr.mxu0 0.0
    %219 = vmatpush1.msra.mxu0 0.0
    %220 = vmatprep.subr.mxu0 0.0
    %221 = vmatpush1.msra.mxu0 0.0
    %222 = vmatprep.subr.mxu0 0.0
    %223 = vmatpush1.msra.mxu0 0.0
    %224 = vmatprep.subr.mxu0 0.0
    %225 = vmatpush1.msra.mxu0 0.0
    %226 = vmatprep.subr.mxu0 0.0
    %227 = vmatpush1.msra.mxu0 0.0
    %228 = vmatprep.subr.mxu0 0.0
    %229 = vmatpush1.msra.mxu0 0.0
    %230 = vmatprep.subr.mxu0 0.0
    %231 = vmatpush1.msra.mxu0 0.0
    %232 = vmatprep.subr.mxu0 0.0
    %233 = vmatpush1.msra.mxu0 0.0
    %234 = vmatprep.subr.mxu0 0.0
    %235 = vmatpush1.msra.mxu0 0.0
    %236 = vmatprep.subr.mxu0 0.0
    %237 = vmatpush1.msra.mxu0 0.0
    %238 = vmatprep.subr.mxu0 0.0
    %239 = vmatpush1.msra.mxu0 0.0
    %240 = vmatprep.subr.mxu0 0.0
    %241 = vmatpush1.msra.mxu0 0.0
    %242 = vmatprep.subr.mxu0 0.0
    %243 = vmatpush1.msra.mxu0 %v28
    %244 = vmatprep.subr.mxu0 0.0
    %245 = vmatpush2.msra.mxu0 0.0
    %246 = vmatprep.subr.mxu0 0.0
    %247 = vmatpush2.msra.mxu0 0.0
    %248 = vmatprep.subr.mxu0 0.0
    %249 = vmatpush2.msra.mxu0 0.0
    %250 = vmatprep.subr.mxu0 0.0
    %251 = vmatpush2.msra.mxu0 0.0
    %252 = vmatprep.subr.mxu0 0.0
    %253 = vmatpush2.msra.mxu0 0.0
    %254 = vmatprep.subr.mxu0 0.0
    %255 = vmatpush2.msra.mxu0 0.0
    %256 = vmatprep.subr.mxu0 0.0
    %257 = vmatpush2.msra.mxu0 0.0
    %258 = vmatprep.subr.mxu0 0.0
    %259 = vmatpush2.msra.mxu0 0.0
    %260 = vmatprep.subr.mxu0 0.0
    %261 = vmatpush2.msra.mxu0 0.0
    %262 = vmatprep.subr.mxu0 0.0
    %263 = vmatpush2.msra.mxu0 0.0
    %264 = vmatprep.subr.mxu0 0.0
    %265 = vmatpush2.msra.mxu0 0.0
    %266 = vmatprep.subr.mxu0 0.0
    %267 = vmatpush2.msra.mxu0 0.0
    %268 = vmatprep.subr.mxu0 0.0
    %269 = vmatpush2.msra.mxu0 0.0
    %270 = vmatprep.subr.mxu0 0.0
    %271 = vmatpush2.msra.mxu0 0.0
    %272 = vmatprep.subr.mxu0 0.0
    %273 = vmatpush2.msra.mxu0 0.0
    %274 = vmatprep.subr.mxu0 0.0
    %275 = vmatpush2.msra.mxu0 0.0
    %276 = vmatprep.mubr.f32.mxu0 0.0
    %277 = vmatmul.mubr.f32.gmra.mxu0 %v210
    %v278 = vpop.f32.mrf.mxu0
    %v279 = vadd.f32 0.0, %v278
    %v280 = vpop.f32.mrf.mxu0
    %281 = vdwg.mxu0
    %v283 = vsel %vm208, %v207, 0
    %285 = vmatprep.subr.mxu0 0.0
    %286 = vmatpush1.msra.mxu0 0.0
    %287 = vmatprep.subr.mxu0 0.0
    %288 = vmatpush1.msra.mxu0 0.0
    %289 = vmatprep.subr.mxu0 0.0
    %290 = vmatpush1.msra.mxu0 0.0
    %291 = vmatprep.subr.mxu0 0.0
    %292 = vmatpush1.msra.mxu0 0.0
    %293 = vmatprep.subr.mxu0 0.0
    %294 = vmatpush1.msra.mxu0 0.0
    %295 = vmatprep.subr.mxu0 0.0
    %296 = vmatpush1.msra.mxu0 0.0
    %297 = vmatprep.subr.mxu0 0.0
    %298 = vmatpush1.msra.mxu0 0.0
    %299 = vmatprep.subr.mxu0 0.0
    %300 = vmatpush1.msra.mxu0 0.0
    %301 = vmatprep.subr.mxu0 0.0
    %302 = vmatpush1.msra.mxu0 0.0
    %303 = vmatprep.subr.mxu0 0.0
    %304 = vmatpush1.msra.mxu0 0.0
    %305 = vmatprep.subr.mxu0 0.0
    %306 = vmatpush1.msra.mxu0 0.0
    %307 = vmatprep.subr.mxu0 0.0
    %308 = vmatpush1.msra.mxu0 0.0
    %309 = vmatprep.subr.mxu0 0.0
    %310 = vmatpush1.msra.mxu0 0.0
    %311 = vmatprep.subr.mxu0 0.0
    %312 = vmatpush1.msra.mxu0 0.0
    %313 = vmatprep.subr.mxu0 0.0
    %314 = vmatpush1.msra.mxu0 0.0
    %315 = vmatprep.subr.mxu0 0.0
    %316 = vmatpush1.msra.mxu0 %v29
    %317 = vmatprep.subr.mxu0 0.0
    %318 = vmatpush2.msra.mxu0 0.0
    %319 = vmatprep.subr.mxu0 0.0
    %320 = vmatpush2.msra.mxu0 0.0
    %321 = vmatprep.subr.mxu0 0.0
    %322 = vmatpush2.msra.mxu0 0.0
    %323 = vmatprep.subr.mxu0 0.0
    %324 = vmatpush2.msra.mxu0 0.0
    %325 = vmatprep.subr.mxu0 0.0
    %326 = vmatpush2.msra.mxu0 0.0
    %327 = vmatprep.subr.mxu0 0.0
    %328 = vmatpush2.msra.mxu0 0.0
    %329 = vmatprep.subr.mxu0 0.0
    %330 = vmatpush2.msra.mxu0 0.0
    %331 = vmatprep.subr.mxu0 0.0
    %332 = vmatpush2.msra.mxu0 0.0
    %333 = vmatprep.subr.mxu0 0.0
    %334 = vmatpush2.msra.mxu0 0.0
    %335 = vmatprep.subr.mxu0 0.0
    %336 = vmatpush2.msra.mxu0 0.0
    %337 = vmatprep.subr.mxu0 0.0
    %338 = vmatpush2.msra.mxu0 0.0
    %339 = vmatprep.subr.mxu0 0.0
    %340 = vmatpush2.msra.mxu0 0.0
    %341 = vmatprep.subr.mxu0 0.0
    %342 = vmatpush2.msra.mxu0 0.0
    %343 = vmatprep.subr.mxu0 0.0
    %344 = vmatpush2.msra.mxu0 0.0
    %345 = vmatprep.subr.mxu0 0.0
    %346 = vmatpush2.msra.mxu0 0.0
    %347 = vmatprep.subr.mxu0 0.0
    %348 = vmatpush2.msra.mxu0 0.0
    %349 = vmatprep.mubr.f32.mxu0 0.0
    %350 = vmatmul.mubr.f32.gmra.mxu0 %v283
    %v351 = vpop.f32.mrf.mxu0
    %v352 = vadd.f32 0.0, %v351
    %v353 = vpop.f32.mrf.mxu0
    %354 = vdwg.mxu0
    %v356 = vrot.slane %v202, 1
    %v359 = vmul.f32 %v279, %v202
    %v360 = vmul.f32 %v352, %v356
    %v361 = vmul.f32 %v279, 0.125
    %v362 = vmul.f32 %v352, 0.125
    %v363 = vld [vmem:[%s5] sm:$0xff]
    %v364 = vld [vmem:[%s5 + $0x8] sm:$0xff]
    %v365 = vld [vmem:[%s5 + $0x10] sm:$0xff]
    %v366 = vld [vmem:[%s5 + $0x18] sm:$0xff]
    %v367 = vld [vmem:[%s6] sm:$0x1]
    %v369 = vlaneseq
    %v370 = vshrl.u32 %v369, 7
    %v371 = vsub.s32 0, %v370
    %v372 = vrot.slane %v367, %v371
    %v376 = vrot.slane %v361, 1
    %v377 = vsel %vm157, %v362, %v376
    %v378 = vsel %vm41, %v377, 0
    %380 = vmatprep.subr.mxu0 0.0
    %381 = vmatpush1.msra.mxu0 0.0
    %382 = vmatprep.subr.mxu0 0.0
    %383 = vmatpush1.msra.mxu0 0.0
    %384 = vmatprep.subr.mxu0 0.0
    %385 = vmatpush1.msra.mxu0 0.0
    %386 = vmatprep.subr.mxu0 0.0
    %387 = vmatpush1.msra.mxu0 0.0
    %388 = vmatprep.subr.mxu0 0.0
    %389 = vmatpush1.msra.mxu0 0.0
    %390 = vmatprep.subr.mxu0 0.0
    %391 = vmatpush1.msra.mxu0 0.0
    %392 = vmatprep.subr.mxu0 0.0
    %393 = vmatpush1.msra.mxu0 0.0
    %394 = vmatprep.subr.mxu0 0.0
    %395 = vmatpush1.msra.mxu0 0.0
    %396 = vmatprep.subr.mxu0 0.0
    %397 = vmatpush1.msra.mxu0 0.0
    %398 = vmatprep.subr.mxu0 0.0
    %399 = vmatpush1.msra.mxu0 0.0
    %400 = vmatprep.subr.mxu0 0.0
    %401 = vmatpush1.msra.mxu0 0.0
    %402 = vmatprep.subr.mxu0 0.0
    %403 = vmatpush1.msra.mxu0 0.0
    %404 = vmatprep.subr.mxu0 0.0
    %405 = vmatpush1.msra.mxu0 %v366
    %406 = vmatprep.subr.mxu0 0.0
    %407 = vmatpush1.msra.mxu0 %v365
    %408 = vmatprep.subr.mxu0 0.0
    %409 = vmatpush1.msra.mxu0 %v364
    %410 = vmatprep.subr.mxu0 0.0
    %411 = vmatpush1.msra.mxu0 %v363
    %412 = vmatprep.subr.mxu0 0.0
    %413 = vmatpush2.msra.mxu0 0.0
    %414 = vmatprep.subr.mxu0 0.0
    %415 = vmatpush2.msra.mxu0 0.0
    %416 = vmatprep.subr.mxu0 0.0
    %417 = vmatpush2.msra.mxu0 0.0
    %418 = vmatprep.subr.mxu0 0.0
    %419 = vmatpush2.msra.mxu0 0.0
    %420 = vmatprep.subr.mxu0 0.0
    %421 = vmatpush2.msra.mxu0 0.0
    %422 = vmatprep.subr.mxu0 0.0
    %423 = vmatpush2.msra.mxu0 0.0
    %424 = vmatprep.subr.mxu0 0.0
    %425 = vmatpush2.msra.mxu0 0.0
    %426 = vmatprep.subr.mxu0 0.0
    %427 = vmatpush2.msra.mxu0 0.0
    %428 = vmatprep.subr.mxu0 0.0
    %429 = vmatpush2.msra.mxu0 0.0
    %430 = vmatprep.subr.mxu0 0.0
    %431 = vmatpush2.msra.mxu0 0.0
    %432 = vmatprep.subr.mxu0 0.0
    %433 = vmatpush2.msra.mxu0 0.0
    %434 = vmatprep.subr.mxu0 0.0
    %435 = vmatpush2.msra.mxu0 0.0
    %436 = vmatprep.subr.mxu0 0.0
    %437 = vmatpush2.msra.mxu0 0.0
    %438 = vmatprep.subr.mxu0 0.0
    %439 = vmatpush2.msra.mxu0 0.0
    %440 = vmatprep.subr.mxu0 0.0
    %441 = vmatpush2.msra.mxu0 0.0
    %442 = vmatprep.subr.mxu0 0.0
    %443 = vmatpush2.msra.mxu0 0.0
    %444 = vmatprep.mubr.f32.mxu0 0.0
    %445 = vmatmul.mubr.f32.gmra.mxu0 %v378
    %v446 = vpop.f32.mrf.mxu0
    %v447 = vadd.f32 %v372, %v446
    %v448 = vpop.f32.mrf.mxu0
    %449 = vdwg.mxu0
    %v451 = vrot.slane %v447, 1
    %v454 = vadd.f32 %v359, %v447
    %v455 = vadd.f32 %v360, %v451
    %v458 = vrot.slane %v455, 7
    %v459 = vsel %vm157, %v458, %v454
    %vm461 = vcmask 254976
    %462 = vst.msk [vmem:[#allocation3] sm:$0x3] %vm461, %v459
    // Predicated region
    $region30: #{tpu_custom_call.1} parent=1 // pred_check
      _
    $region31: #{tpu_custom_call.1} parent=1 // pred_check_branch
      %464 = sbr.rel (0) target = $region33
    $region32: #{tpu_custom_call.1} parent=1 // pred_region
      %s466 = ssub.s32 32, 32
      %467 = vsyncadd [#allocation4], %s466
      %s469 = sshll.u32 [#allocation3], 4
      %s470 = int_to_ptr.vmem [resolvable:$true] %s469
      %472 = dma.vmem_to_hbm [thread:$0]  %s470, 32, %s7, [#allocation4]
    $region33: #{tpu_custom_call.1} parent=1 // pred_fallthru
      _
    // Predicated region
    $region34: #{tpu_custom_call.1} parent=1 // pred_check
      _
    $region35: #{tpu_custom_call.1} parent=1 // pred_check_branch
      %474 = sbr.rel (0) target = $region37
    $region36: #{tpu_custom_call.1} parent=1 // pred_region
      %475 = dma.done [#allocation4], 32
    $region37: #{tpu_custom_call.1} parent=1 // pred_fallthru
      _
    %476 = vsyncpa [#allocation4], 1

// kernel: tpu_custom_call.1
$region0: #{tpu_custom_call.1}
  #allocation0 [shape = 'u32[]', space=smem, size = 0x4, offset = 0x4, fixed_abs, tag = 'smem constant byte address 0x4 - core index']
  #allocation1 [shape = 'u32[144,128]{1,0:T(1,128)}', space=vmem, size = 0x12000, scoped, tag = 'internal scratch']
  #allocation2 [shape = 'f32[1,1]{1,0:T(1,128)S(6)}', space=smem, size = 0x200, scoped, tag = 'scoped memory for tpu_custom_call.1']
  %s0 = inlined_call_operand.vmem [shape: f32[2,8,32], index: 0, kind: input, shape index: {}]
  %s1 = inlined_call_operand.vmem [shape: f32[32,16], index: 1, kind: input, shape index: {}]
  %s2 = inlined_call_operand.vmem [shape: f32[1,16], index: 2, kind: input, shape index: {}]
  %s3 = inlined_call_operand.vmem [shape: f32[1,16], index: 3, kind: input, shape index: {}]
  %s4 = inlined_call_operand.<no memory space> [shape: f32[1,1], index: 4, kind: input, shape index: {}]
  %s5 = inlined_call_operand.vmem [shape: f32[32,32], index: 5, kind: input, shape index: {}]
  %s6 = inlined_call_operand.vmem [shape: f32[1,32], index: 6, kind: input, shape index: {}]
  %s7 = inlined_call_operand.hbm [shape: f32[2,32], index: 7, kind: output, shape index: {}]
  %s8 = sld [smem:[#allocation0]]
  $region38: #{tpu_custom_call.1} parent=0
    _
  %s10 = ssub.s32 1, %s8
  %s11 = scalar_select 0, %s10, %s8
  %12 = sst [smem:[#allocation2]] %s4
  $region1: #{tpu_custom_call.1} parent=0
    #allocation3 [shape = 'u8[1024]{0}', space=vmem, size = 0x400, scoped, tag = 'output window, operand 0, single buffered']
    #allocation4 [shape = 's32[1]{0}', space=sflag, size = 0x4, scoped, tag = 'scoped memory for tpu_custom_call.1']
    %13 = vsyncpa [#allocation4], 0
    // Predicated region
    $region2: #{tpu_custom_call.1} parent=1 // pred_check
      _
    $region3: #{tpu_custom_call.1} parent=1 // pred_check_branch
      %15 = sbr.rel (0) target = $region5
    $region4: #{tpu_custom_call.1} parent=1 // pred_region
      _
    $region5: #{tpu_custom_call.1} parent=1 // pred_fallthru
      _
    // Predicated region
    $region6: #{tpu_custom_call.1} parent=1 // pred_check
      _
    $region7: #{tpu_custom_call.1} parent=1 // pred_check_branch
      %17 = sbr.rel (0) target = $region9
    $region8: #{tpu_custom_call.1} parent=1 // pred_region
      _
    $region9: #{tpu_custom_call.1} parent=1 // pred_fallthru
      _
    // Predicated region
    $region10: #{tpu_custom_call.1} parent=1 // pred_check
      _
    $region11: #{tpu_custom_call.1} parent=1 // pred_check_branch
      %19 = sbr.rel (0) target = $region13
    $region12: #{tpu_custom_call.1} parent=1 // pred_region
      _
    $region13: #{tpu_custom_call.1} parent=1 // pred_fallthru
      _
    // Predicated region
    $region14: #{tpu_custom_call.1} parent=1 // pred_check
      _
    $region15: #{tpu_custom_call.1} parent=1 // pred_check_branch
      %21 = sbr.rel (0) target = $region17
    $region16: #{tpu_custom_call.1} parent=1 // pred_region
      _
    $region17: #{tpu_custom_call.1} parent=1 // pred_fallthru
      _
    // Predicated region
    $region18: #{tpu_custom_call.1} parent=1 // pred_check
      _
    $region19: #{tpu_custom_call.1} parent=1 // pred_check_branch
      %23 = sbr.rel (0) target = $region21
    $region20: #{tpu_custom_call.1} parent=1 // pred_region
      _
    $region21: #{tpu_custom_call.1} parent=1 // pred_fallthru
      _
    // Predicated region
    $region22: #{tpu_custom_call.1} parent=1 // pred_check
      _
    $region23: #{tpu_custom_call.1} parent=1 // pred_check_branch
      %25 = sbr.rel (0) target = $region25
    $region24: #{tpu_custom_call.1} parent=1 // pred_region
      _
    $region25: #{tpu_custom_call.1} parent=1 // pred_fallthru
      _
    // Predicated region
    $region26: #{tpu_custom_call.1} parent=1 // pred_check
      _
    $region27: #{tpu_custom_call.1} parent=1 // pred_check_branch
      %27 = sbr.rel (0) target = $region29
    $region28: #{tpu_custom_call.1} parent=1 // pred_region
      _
    $region29: #{tpu_custom_call.1} parent=1 // pred_fallthru
      _
    %v28 = vld [vmem:[%s0] sm:$0xff]
    %v29 = vld [vmem:[%s0 + $0x8] sm:$0xff]
    %v30 = vld [vmem:[%s1] sm:$0xff]
    %v31 = vld [vmem:[%s1 + $0x8] sm:$0xff]
    %v32 = vld [vmem:[%s1 + $0x10] sm:$0xff]
    %v33 = vld [vmem:[%s1 + $0x18] sm:$0xff]
    %v34 = vld [vmem:[%s2] sm:$0x1]
    %v36 = vlaneseq
    %v37 = vshrl.u32 %v36, 7
    %v38 = vsub.s32 0, %v37
    %v39 = vrot.slane %v34, %v38
    %vm41 = vcmask 261120
    %v43 = vsel %vm41, %v28, 0
    %v46 = vsel %vm41, %v29, 0
    %48 = vmatprep.subr.mxu0 0.0
    %49 = vmatpush1.msra.mxu0 0.0
    %50 = vmatprep.subr.mxu0 0.0
    %51 = vmatpush1.msra.mxu0 0.0
    %52 = vmatprep.subr.mxu0 0.0
    %53 = vmatpush1.msra.mxu0 0.0
    %54 = vmatprep.subr.mxu0 0.0
    %55 = vmatpush1.msra.mxu0 0.0
    %56 = vmatprep.subr.mxu0 0.0
    %57 = vmatpush1.msra.mxu0 0.0
    %58 = vmatprep.subr.mxu0 0.0
    %59 = vmatpush1.msra.mxu0 0.0
    %60 = vmatprep.subr.mxu0 0.0
    %61 = vmatpush1.msra.mxu0 0.0
    %62 = vmatprep.subr.mxu0 0.0
    %63 = vmatpush1.msra.mxu0 0.0
    %64 = vmatprep.subr.mxu0 0.0
    %65 = vmatpush1.msra.mxu0 0.0
    %66 = vmatprep.subr.mxu0 0.0
    %67 = vmatpush1.msra.mxu0 0.0
    %68 = vmatprep.subr.mxu0 0.0
    %69 = vmatpush1.msra.mxu0 0.0
    %70 = vmatprep.subr.mxu0 0.0
    %71 = vmatpush1.msra.mxu0 0.0
    %72 = vmatprep.subr.mxu0 0.0
    %73 = vmatpush1.msra.mxu0 %v33
    %74 = vmatprep.subr.mxu0 0.0
    %75 = vmatpush1.msra.mxu0 %v32
    %76 = vmatprep.subr.mxu0 0.0
    %77 = vmatpush1.msra.mxu0 %v31
    %78 = vmatprep.subr.mxu0 0.0
    %79 = vmatpush1.msra.mxu0 %v30
    %80 = vmatprep.subr.mxu0 0.0
    %81 = vmatpush2.msra.mxu0 0.0
    %82 = vmatprep.subr.mxu0 0.0
    %83 = vmatpush2.msra.mxu0 0.0
    %84 = vmatprep.subr.mxu0 0.0
    %85 = vmatpush2.msra.mxu0 0.0
    %86 = vmatprep.subr.mxu0 0.0
    %87 = vmatpush2.msra.mxu0 0.0
    %88 = vmatprep.subr.mxu0 0.0
    %89 = vmatpush2.msra.mxu0 0.0
    %90 = vmatprep.subr.mxu0 0.0
    %91 = vmatpush2.msra.mxu0 0.0
    %92 = vmatprep.subr.mxu0 0.0
    %93 = vmatpush2.msra.mxu0 0.0
    %94 = vmatprep.subr.mxu0 0.0
    %95 = vmatpush2.msra.mxu0 0.0
    %96 = vmatprep.subr.mxu0 0.0
    %97 = vmatpush2.msra.mxu0 0.0
    %98 = vmatprep.subr.mxu0 0.0
    %99 = vmatpush2.msra.mxu0 0.0
    %100 = vmatprep.subr.mxu0 0.0
    %101 = vmatpush2.msra.mxu0 0.0
    %102 = vmatprep.subr.mxu0 0.0
    %103 = vmatpush2.msra.mxu0 0.0
    %104 = vmatprep.subr.mxu0 0.0
    %105 = vmatpush2.msra.mxu0 0.0
    %106 = vmatprep.subr.mxu0 0.0
    %107 = vmatpush2.msra.mxu0 0.0
    %108 = vmatprep.subr.mxu0 0.0
    %109 = vmatpush2.msra.mxu0 0.0
    %110 = vmatprep.subr.mxu0 0.0
    %111 = vmatpush2.msra.mxu0 0.0
    %112 = vmatprep.mubr.f32.mxu0 0.0
    %113 = vmatmul.mubr.f32.gmra.mxu0 %v43
    %v114 = vpop.f32.mrf.mxu0
    %v115 = vadd.f32 %v39, %v114
    %v116 = vpop.f32.mrf.mxu0
    %117 = vmatprep.mubr.f32.mxu0 0.0
    %118 = vmatmul.mubr.f32.gmra.mxu0 %v46
    %v119 = vpop.f32.mrf.mxu0
    %v120 = vadd.f32 %v39, %v119
    %v121 = vpop.f32.mrf.mxu0
    %122 = vdwg.mxu0
    %v123 = vtanh.pop %v115
    %v124 = vtanh.pop %v120
    %v125 = vld [vmem:[%s3] sm:$0x1]
    %v127 = vlaneseq
    %v128 = vshrl.u32 %v127, 7
    %v129 = vsub.s32 0, %v128
    %v130 = vrot.slane %v125, %v129
    %v132 = vmul.f32 %v123, %v130
    %v133 = vmul.f32 %v124, %v130
    %vm134 = vcmask 130048
    %v135 = vsel %vm134, %v132, 0.0
    %136 = vadd.xlane.f32.xlu0 %v135
    %v137 = vpop.xlane.xlu0 %136
    %v138 = vsel %vm134, %v133, 0.0
    %139 = vadd.xlane.f32.xlu0 %v138
    %v140 = vpop.xlane.xlu0 %139
    %s141 = sld [smem:[#allocation2]]
    %v142 = vstv %s141
    %v143 = vadd.f32 %v137, %v142
    %v144 = vadd.f32 %v140, %v142
    %v147 = vlaneseq
    %v148 = vand.u32 %v147, 127
    %v149 = vlaneseq
    %v150 = vshrl.u32 %v149, 7
    %v151 = vsub.s32 %v148, %v150
    %v152 = vrot.slane %v143, %v151
    %v153 = vlaneseq
    %v154 = vshrl.u32 %v153, 7
    %v155 = vsub.s32 %v148, %v154
    %v156 = vrot.slane %v144, %v155
    %vm157 = vcmask 1041409
    %v158 = vsel %vm157, %v156, %v152
    %vm160 = vcmask 58368
    %v161 = vsel %vm160, %v158, -inf
    %162 = vmax.xlane.f32.xlu0 %v161
    %v163 = vpop.xlane.xlu0 %162
    %v165 = vlaneseq
    %v166 = vshrl.u32 %v165, 7
    %v167 = vsub.s32 0, %v166
    %v168 = vrot.slane %v163, %v167
    %v169 = vlaneseq
    %v170 = vshrl.u32 %v169, 7
    %v171 = vsub.s32 1, %v170
    %v172 = vrot.slane %v163, %v171
    %v175 = vsub.f32 %v143, %v168
    %v176 = vsub.f32 %v144, %v172
    %v177 = vmul.f32 %v175, 1.442695
    %v178 = vpow.pop %v177
    %v179 = vmul.f32 %v176, 1.442695
    %v180 = vpow.pop %v179
    %183 = vset.pattern.permute.xlu0 0
    %184 = vperm.xlu0 %183, %v178
    %v185 = vpop.permute.xlu0 %184
    %186 = vset.pattern.permute.xlu0 0
    %187 = vperm.xlu0 %186, %v180
    %v188 = vpop.permute.xlu0 %187
    %v189 = vlaneseq
    %v190 = vshrl.u32 %v189, 7
    %v191 = vsub.s32 %v148, %v190
    %v192 = vrot.slane %v185, %v191
    %v193 = vlaneseq
    %v194 = vshrl.u32 %v193, 7
    %v195 = vsub.s32 %v148, %v194
    %v196 = vrot.slane %v188, %v195
    %v197 = vsel %vm157, %v196, %v192
    %v199 = vsel %vm160, %v197, 0.0
    %200 = vadd.xlane.f32.xlu0 %v199
    %v201 = vpop.xlane.xlu0 %200
    %v202 = vrcp.pop %v201
    %vm205 = vcmask 1040384
    %v206 = vsel %vm205, %v192, 1.0
    %v207 = vsel %vm205, %v196, 1.0
    %vm208 = vcmask 64512
    %v210 = vsel %vm208, %v206, 0
    %212 = vmatprep.subr.mxu0 0.0
    %213 = vmatpush1.msra.mxu0 0.0
    %214 = vmatprep.subr.mxu0 0.0
    %215 = vmatpush1.msra.mxu0 0.0
    %216 = vmatprep.subr.mxu0 0.0
    %217 = vmatpush1.msra.mxu0 0.0
    %218 = vmatprep.subr.mxu0 0.0
    %219 = vmatpush1.msra.mxu0 0.0
    %220 = vmatprep.subr.mxu0 0.0
    %221 = vmatpush1.msra.mxu0 0.0
    %222 = vmatprep.subr.mxu0 0.0
    %223 = vmatpush1.msra.mxu0 0.0
    %224 = vmatprep.subr.mxu0 0.0
    %225 = vmatpush1.msra.mxu0 0.0
    %226 = vmatprep.subr.mxu0 0.0
    %227 = vmatpush1.msra.mxu0 0.0
    %228 = vmatprep.subr.mxu0 0.0
    %229 = vmatpush1.msra.mxu0 0.0
    %230 = vmatprep.subr.mxu0 0.0
    %231 = vmatpush1.msra.mxu0 0.0
    %232 = vmatprep.subr.mxu0 0.0
    %233 = vmatpush1.msra.mxu0 0.0
    %234 = vmatprep.subr.mxu0 0.0
    %235 = vmatpush1.msra.mxu0 0.0
    %236 = vmatprep.subr.mxu0 0.0
    %237 = vmatpush1.msra.mxu0 0.0
    %238 = vmatprep.subr.mxu0 0.0
    %239 = vmatpush1.msra.mxu0 0.0
    %240 = vmatprep.subr.mxu0 0.0
    %241 = vmatpush1.msra.mxu0 0.0
    %242 = vmatprep.subr.mxu0 0.0
    %243 = vmatpush1.msra.mxu0 %v28
    %244 = vmatprep.subr.mxu0 0.0
    %245 = vmatpush2.msra.mxu0 0.0
    %246 = vmatprep.subr.mxu0 0.0
    %247 = vmatpush2.msra.mxu0 0.0
    %248 = vmatprep.subr.mxu0 0.0
    %249 = vmatpush2.msra.mxu0 0.0
    %250 = vmatprep.subr.mxu0 0.0
    %251 = vmatpush2.msra.mxu0 0.0
    %252 = vmatprep.subr.mxu0 0.0
    %253 = vmatpush2.msra.mxu0 0.0
    %254 = vmatprep.subr.mxu0 0.0
    %255 = vmatpush2.msra.mxu0 0.0
    %256 = vmatprep.subr.mxu0 0.0
    %257 = vmatpush2.msra.mxu0 0.0
    %258 = vmatprep.subr.mxu0 0.0
    %259 = vmatpush2.msra.mxu0 0.0
    %260 = vmatprep.subr.mxu0 0.0
    %261 = vmatpush2.msra.mxu0 0.0
    %262 = vmatprep.subr.mxu0 0.0
    %263 = vmatpush2.msra.mxu0 0.0
    %264 = vmatprep.subr.mxu0 0.0
    %265 = vmatpush2.msra.mxu0 0.0
    %266 = vmatprep.subr.mxu0 0.0
    %267 = vmatpush2.msra.mxu0 0.0
    %268 = vmatprep.subr.mxu0 0.0
    %269 = vmatpush2.msra.mxu0 0.0
    %270 = vmatprep.subr.mxu0 0.0
    %271 = vmatpush2.msra.mxu0 0.0
    %272 = vmatprep.subr.mxu0 0.0
    %273 = vmatpush2.msra.mxu0 0.0
    %274 = vmatprep.subr.mxu0 0.0
    %275 = vmatpush2.msra.mxu0 0.0
    %276 = vmatprep.mubr.f32.mxu0 0.0
    %277 = vmatmul.mubr.f32.gmra.mxu0 %v210
    %v278 = vpop.f32.mrf.mxu0
    %v279 = vadd.f32 0.0, %v278
    %v280 = vpop.f32.mrf.mxu0
    %281 = vdwg.mxu0
    %v283 = vsel %vm208, %v207, 0
    %285 = vmatprep.subr.mxu0 0.0
    %286 = vmatpush1.msra.mxu0 0.0
    %287 = vmatprep.subr.mxu0 0.0
    %288 = vmatpush1.msra.mxu0 0.0
    %289 = vmatprep.subr.mxu0 0.0
    %290 = vmatpush1.msra.mxu0 0.0
    %291 = vmatprep.subr.mxu0 0.0
    %292 = vmatpush1.msra.mxu0 0.0
    %293 = vmatprep.subr.mxu0 0.0
    %294 = vmatpush1.msra.mxu0 0.0
    %295 = vmatprep.subr.mxu0 0.0
    %296 = vmatpush1.msra.mxu0 0.0
    %297 = vmatprep.subr.mxu0 0.0
    %298 = vmatpush1.msra.mxu0 0.0
    %299 = vmatprep.subr.mxu0 0.0
    %300 = vmatpush1.msra.mxu0 0.0
    %301 = vmatprep.subr.mxu0 0.0
    %302 = vmatpush1.msra.mxu0 0.0
    %303 = vmatprep.subr.mxu0 0.0
    %304 = vmatpush1.msra.mxu0 0.0
    %305 = vmatprep.subr.mxu0 0.0
    %306 = vmatpush1.msra.mxu0 0.0
    %307 = vmatprep.subr.mxu0 0.0
    %308 = vmatpush1.msra.mxu0 0.0
    %309 = vmatprep.subr.mxu0 0.0
    %310 = vmatpush1.msra.mxu0 0.0
    %311 = vmatprep.subr.mxu0 0.0
    %312 = vmatpush1.msra.mxu0 0.0
    %313 = vmatprep.subr.mxu0 0.0
    %314 = vmatpush1.msra.mxu0 0.0
    %315 = vmatprep.subr.mxu0 0.0
    %316 = vmatpush1.msra.mxu0 %v29
    %317 = vmatprep.subr.mxu0 0.0
    %318 = vmatpush2.msra.mxu0 0.0
    %319 = vmatprep.subr.mxu0 0.0
    %320 = vmatpush2.msra.mxu0 0.0
    %321 = vmatprep.subr.mxu0 0.0
    %322 = vmatpush2.msra.mxu0 0.0
    %323 = vmatprep.subr.mxu0 0.0
    %324 = vmatpush2.msra.mxu0 0.0
    %325 = vmatprep.subr.mxu0 0.0
    %326 = vmatpush2.msra.mxu0 0.0
    %327 = vmatprep.subr.mxu0 0.0
    %328 = vmatpush2.msra.mxu0 0.0
    %329 = vmatprep.subr.mxu0 0.0
    %330 = vmatpush2.msra.mxu0 0.0
    %331 = vmatprep.subr.mxu0 0.0
    %332 = vmatpush2.msra.mxu0 0.0
    %333 = vmatprep.subr.mxu0 0.0
    %334 = vmatpush2.msra.mxu0 0.0
    %335 = vmatprep.subr.mxu0 0.0
    %336 = vmatpush2.msra.mxu0 0.0
    %337 = vmatprep.subr.mxu0 0.0
    %338 = vmatpush2.msra.mxu0 0.0
    %339 = vmatprep.subr.mxu0 0.0
    %340 = vmatpush2.msra.mxu0 0.0
    %341 = vmatprep.subr.mxu0 0.0
    %342 = vmatpush2.msra.mxu0 0.0
    %343 = vmatprep.subr.mxu0 0.0
    %344 = vmatpush2.msra.mxu0 0.0
    %345 = vmatprep.subr.mxu0 0.0
    %346 = vmatpush2.msra.mxu0 0.0
    %347 = vmatprep.subr.mxu0 0.0
    %348 = vmatpush2.msra.mxu0 0.0
    %349 = vmatprep.mubr.f32.mxu0 0.0
    %350 = vmatmul.mubr.f32.gmra.mxu0 %v283
    %v351 = vpop.f32.mrf.mxu0
    %v352 = vadd.f32 0.0, %v351
    %v353 = vpop.f32.mrf.mxu0
    %354 = vdwg.mxu0
    %v356 = vrot.slane %v202, 1
    %v359 = vmul.f32 %v279, %v202
    %v360 = vmul.f32 %v352, %v356
    %v361 = vmul.f32 %v279, 0.125
    %v362 = vmul.f32 %v352, 0.125
    %v363 = vld [vmem:[%s5] sm:$0xff]
    %v364 = vld [vmem:[%s5 + $0x8] sm:$0xff]
    %v365 = vld [vmem:[%s5 + $0x10] sm:$0xff]
    %v366 = vld [vmem:[%s5 + $0x18] sm:$0xff]
    %v367 = vld [vmem:[%s6] sm:$0x1]
    %v369 = vlaneseq
    %v370 = vshrl.u32 %v369, 7
    %v371 = vsub.s32 0, %v370
    %v372 = vrot.slane %v367, %v371
    %v376 = vrot.slane %v361, 1
    %v377 = vsel %vm157, %v362, %v376
    %v378 = vsel %vm41, %v377, 0
    %380 = vmatprep.subr.mxu0 0.0
    %381 = vmatpush1.msra.mxu0 0.0
    %382 = vmatprep.subr.mxu0 0.0
    %383 = vmatpush1.msra.mxu0 0.0
    %384 = vmatprep.subr.mxu0 0.0
    %385 = vmatpush1.msra.mxu0 0.0
    %386 = vmatprep.subr.mxu0 0.0
    %387 = vmatpush1.msra.mxu0 0.0
    %388 = vmatprep.subr.mxu0 0.0
    %389 = vmatpush1.msra.mxu0 0.0
    %390 = vmatprep.subr.mxu0 0.0
    %391 = vmatpush1.msra.mxu0 0.0
    %392 = vmatprep.subr.mxu0 0.0
    %393 = vmatpush1.msra.mxu0 0.0
    %394 = vmatprep.subr.mxu0 0.0
    %395 = vmatpush1.msra.mxu0 0.0
    %396 = vmatprep.subr.mxu0 0.0
    %397 = vmatpush1.msra.mxu0 0.0
    %398 = vmatprep.subr.mxu0 0.0
    %399 = vmatpush1.msra.mxu0 0.0
    %400 = vmatprep.subr.mxu0 0.0
    %401 = vmatpush1.msra.mxu0 0.0
    %402 = vmatprep.subr.mxu0 0.0
    %403 = vmatpush1.msra.mxu0 0.0
    %404 = vmatprep.subr.mxu0 0.0
    %405 = vmatpush1.msra.mxu0 %v366
    %406 = vmatprep.subr.mxu0 0.0
    %407 = vmatpush1.msra.mxu0 %v365
    %408 = vmatprep.subr.mxu0 0.0
    %409 = vmatpush1.msra.mxu0 %v364
    %410 = vmatprep.subr.mxu0 0.0
    %411 = vmatpush1.msra.mxu0 %v363
    %412 = vmatprep.subr.mxu0 0.0
    %413 = vmatpush2.msra.mxu0 0.0
    %414 = vmatprep.subr.mxu0 0.0
    %415 = vmatpush2.msra.mxu0 0.0
    %416 = vmatprep.subr.mxu0 0.0
    %417 = vmatpush2.msra.mxu0 0.0
    %418 = vmatprep.subr.mxu0 0.0
    %419 = vmatpush2.msra.mxu0 0.0
    %420 = vmatprep.subr.mxu0 0.0
    %421 = vmatpush2.msra.mxu0 0.0
    %422 = vmatprep.subr.mxu0 0.0
    %423 = vmatpush2.msra.mxu0 0.0
    %424 = vmatprep.subr.mxu0 0.0
    %425 = vmatpush2.msra.mxu0 0.0
    %426 = vmatprep.subr.mxu0 0.0
    %427 = vmatpush2.msra.mxu0 0.0
    %428 = vmatprep.subr.mxu0 0.0
    %429 = vmatpush2.msra.mxu0 0.0
    %430 = vmatprep.subr.mxu0 0.0
    %431 = vmatpush2.msra.mxu0 0.0
    %432 = vmatprep.subr.mxu0 0.0
    %433 = vmatpush2.msra.mxu0 0.0
    %434 = vmatprep.subr.mxu0 0.0
    %435 = vmatpush2.msra.mxu0 0.0
    %436 = vmatprep.subr.mxu0 0.0
    %437 = vmatpush2.msra.mxu0 0.0
    %438 = vmatprep.subr.mxu0 0.0
    %439 = vmatpush2.msra.mxu0 0.0
    %440 = vmatprep.subr.mxu0 0.0
    %441 = vmatpush2.msra.mxu0 0.0
    %442 = vmatprep.subr.mxu0 0.0
    %443 = vmatpush2.msra.mxu0 0.0
    %444 = vmatprep.mubr.f32.mxu0 0.0
    %445 = vmatmul.mubr.f32.gmra.mxu0 %v378
    %v446 = vpop.f32.mrf.mxu0
    %v447 = vadd.f32 %v372, %v446
    %v448 = vpop.f32.mrf.mxu0
    %449 = vdwg.mxu0
    %v451 = vrot.slane %v447, 1
    %v454 = vadd.f32 %v359, %v447
    %v455 = vadd.f32 %v360, %v451
    %v458 = vrot.slane %v455, 7
    %v459 = vsel %vm157, %v458, %v454
    %vm461 = vcmask 254976
    %462 = vst.msk [vmem:[#allocation3] sm:$0x3] %vm461, %v459
    // Predicated region
    $region30: #{tpu_custom_call.1} parent=1 // pred_check
      _
    $region31: #{tpu_custom_call.1} parent=1 // pred_check_branch
      %464 = sbr.rel (0) target = $region33
    $region32: #{tpu_custom_call.1} parent=1 // pred_region
      %s466 = ssub.s32 32, 32
      %467 = vsyncadd [#allocation4], %s466
      %s469 = sshll.u32 [#allocation3], 4
      %s470 = int_to_ptr.vmem [resolvable:$true] %s469
      %472 = dma.vmem_to_hbm [thread:$0]  %s470, 32, %s7, [#allocation4]
    $region33: #{tpu_custom_call.1} parent=1 // pred_fallthru
      _
    // Predicated region
    $region34: #{tpu_custom_call.1} parent=1 // pred_check
      _
    $region35: #{tpu_custom_call.1} parent=1 // pred_check_branch
      %474 = sbr.rel (0) target = $region37
    $region36: #{tpu_custom_call.1} parent=1 // pred_region
      %475 = dma.done [#allocation4], 32
    $region37: #{tpu_custom_call.1} parent=1 // pred_fallthru
      _
    %476 = vsyncpa [#allocation4], 1

</llo_original>
